<compile_context>
chip_gen: v6e
topology: v6e:2x2x1
jax: 0.10.0
libtpu: 0.0.40
codegen_flags: <defaults>
</compile_context>

<pallas_src>
import functools

import jax
import jax.numpy as jnp
from jax import lax
from jax.experimental import pallas as pl
from jax.experimental.pallas import tpu as pltpu

VMEM = pltpu.MemorySpace.VMEM
_EPS = 1e-15


# ----------------------------- Pallas kernel -------------------------------

def _pointer_net_loss_kernel(target_ref, logits_ref, lengths_ref, out_ref, *, norm):
    logits = logits_ref[...]                                     # [B, T, S] f32
    target = target_ref[...]                                     # [B, T]    i32
    lengths = lengths_ref[...]                                   # [B, 1]    i32

    B, T, S = logits.shape

    # logits.clamp(min=eps) -> log, applied to every element (cheap, EUP),
    # then select the target column per (b, t) via a one-hot mask so the
    # gather never leaves the kernel.
    log_p = jnp.log(jnp.maximum(logits, _EPS))                   # [B, T, S]
    src_pos = lax.broadcasted_iota(jnp.int32, (B, T, S), 2)      # [B, T, S]
    onehot = (src_pos == target[:, :, None]).astype(jnp.float32)
    losses = -jnp.sum(log_p * onehot, axis=-1)                   # [B, T]

    # sequence_mask(lengths, T):  t < lengths[b]
    tgt_pos = lax.broadcasted_iota(jnp.int32, (B, T), 1)         # [B, T]
    mask = (tgt_pos < lengths).astype(jnp.float32)               # lengths: [B,1] broadcasts

    masked = losses * mask                                       # [B, T]
    total = jnp.sum(masked, axis=1, keepdims=True)               # [B, 1]
    total = jnp.sum(total, axis=0, keepdims=True)                # [1, 1]
    if norm:
        denom = jnp.sum(lengths.astype(jnp.float32), axis=0, keepdims=True)  # [1, 1]
        total = total / denom
    out_ref[...] = total


def pointer_net_loss(target, logits, lengths, *, norm=False):
    """Pallas equivalent of PointerNetLoss(norm).forward(target, logits, lengths)."""
    B, T, S = logits.shape
    target = target.astype(jnp.int32).reshape(B, T)
    lengths = lengths.astype(jnp.int32).reshape(B, 1)
    out = pl.pallas_call(
        functools.partial(_pointer_net_loss_kernel, norm=norm),
        out_shape=jax.ShapeDtypeStruct((1, 1), jnp.float32),
        in_specs=[pl.BlockSpec(memory_space=VMEM)] * 3,
        out_specs=pl.BlockSpec(memory_space=VMEM),
    )(target, logits.astype(jnp.float32), lengths)
    return out[0, 0]


# ----------------------------- pure-JAX reference ---------------------------

def _reference_loss(target, logits, lengths, *, norm=False):
    log_p = jnp.log(jnp.maximum(logits, _EPS))
    gathered = jnp.take_along_axis(
        log_p, target[..., None].astype(jnp.int32), axis=-1)[..., 0]
    losses = -gathered                                           # [B, T]
    mask = (jnp.arange(logits.shape[1])[None, :] < lengths[:, None]).astype(jnp.float32)
    total = jnp.sum(losses * mask)
    if norm:
        total = total / jnp.sum(lengths.astype(jnp.float32))
    return total


# --------------------------------- main -------------------------------------

if __name__ == "__main__":
    B, T, S = 4, 8, 8   # (batch, tgt_max_len, src_max_len)
    key = jax.random.PRNGKey(0)
    k1, k2, k3 = jax.random.split(key, 3)

    # pointer-network "logits" are softmax alignment scores over the source seq
    logits = jax.nn.softmax(jax.random.normal(k1, (B, T, S), jnp.float32), axis=-1)
    target = jax.random.randint(k2, (B, T), 0, S, jnp.int32)
    lengths = jax.random.randint(k3, (B,), 1, T + 1, jnp.int32)

    # norm=False (module default)
    loss = jax.jit(pointer_net_loss)(target, logits, lengths)
    jax.block_until_ready(loss)
    ref = _reference_loss(target, logits, lengths)
    assert loss.shape == ()
    assert bool(jnp.isfinite(loss))
    assert jnp.allclose(loss, ref, rtol=1e-5, atol=1e-5), (loss, ref)

    # norm=True path
    loss_n = jax.jit(functools.partial(pointer_net_loss, norm=True))(target, logits, lengths)
    jax.block_until_ready(loss_n)
    ref_n = _reference_loss(target, logits, lengths, norm=True)
    assert jnp.allclose(loss_n, ref_n, rtol=1e-5, atol=1e-5), (loss_n, ref_n)

    print("KERNEL_OK")
</pallas_src>

<mosaic_0001>
module attributes {stable_mosaic.version = 11 : i64} {
  func.func @_pointer_net_loss_kernel(%arg0: memref<4x8xi32, #tpu.memory_space<vmem>>, %arg1: memref<4x8x8xf32, #tpu.memory_space<vmem>>, %arg2: memref<4x1xi32, #tpu.memory_space<vmem>>, %arg3: memref<1x1xf32, #tpu.memory_space<vmem>>) attributes {dimension_semantics = [], scalar_prefetch = 0 : i64, scratch_operands = 0 : i64, tpu.core_type = #tpu.core_type<tc>} {
    %c0 = arith.constant 0 : index
    %c0_0 = arith.constant 0 : index
    %c0_1 = arith.constant 0 : index
    %0 = vector.load %arg1[%c0, %c0_0, %c0_1] : memref<4x8x8xf32, #tpu.memory_space<vmem>>, vector<4x8x8xf32>
    %c0_2 = arith.constant 0 : index
    %c0_3 = arith.constant 0 : index
    %1 = vector.load %arg0[%c0_2, %c0_3] : memref<4x8xi32, #tpu.memory_space<vmem>>, vector<4x8xi32>
    %c0_4 = arith.constant 0 : index
    %c0_5 = arith.constant 0 : index
    %2 = vector.load %arg2[%c0_4, %c0_5] : memref<4x1xi32, #tpu.memory_space<vmem>>, vector<4x1xi32>
    %cst = arith.constant 1.000000e-15 : f32
    %3 = vector.broadcast %cst : f32 to vector<4x8x8xf32>
    %4 = arith.maximumf %0, %3 : vector<4x8x8xf32>
    %5 = math.log %4 : vector<4x8x8xf32>
    %6 = tpu.iota {dimensions = array<i32: 2>} : vector<4x8x8xi32>
    %7 = vector.shape_cast %1 : vector<4x8xi32> to vector<4x8x1xi32>
    %8 = vector.broadcast %7 : vector<4x8x1xi32> to vector<4x8x8xi32>
    %9 = arith.cmpi eq, %6, %8 : vector<4x8x8xi32>
    %10 = arith.extui %9 : vector<4x8x8xi1> to vector<4x8x8xi32>
    %11 = arith.sitofp %10 : vector<4x8x8xi32> to vector<4x8x8xf32>
    %12 = arith.mulf %5, %11 : vector<4x8x8xf32>
    %cst_6 = arith.constant dense<0.000000e+00> : vector<4x8xf32>
    %13 = vector.multi_reduction <add>, %12, %cst_6 [2] : vector<4x8x8xf32> to vector<4x8xf32>
    %cst_7 = arith.constant 0.000000e+00 : f32
    %14 = vector.broadcast %cst_7 : f32 to vector<4x8xf32>
    %15 = arith.subf %14, %13 : vector<4x8xf32>
    %16 = tpu.iota {dimensions = array<i32: 1>} : vector<4x8xi32>
    %17 = vector.broadcast %2 : vector<4x1xi32> to vector<4x8xi32>
    %18 = arith.cmpi slt, %16, %17 : vector<4x8xi32>
    %19 = arith.extui %18 : vector<4x8xi1> to vector<4x8xi32>
    %20 = arith.sitofp %19 : vector<4x8xi32> to vector<4x8xf32>
    %21 = arith.mulf %15, %20 : vector<4x8xf32>
    %cst_8 = arith.constant dense<0.000000e+00> : vector<4xf32>
    %22 = vector.multi_reduction <add>, %21, %cst_8 [1] : vector<4x8xf32> to vector<4xf32>
    %23 = vector.shape_cast %22 : vector<4xf32> to vector<4x1xf32>
    %cst_9 = arith.constant dense<0.000000e+00> : vector<1xf32>
    %24 = vector.multi_reduction <add>, %23, %cst_9 [0] : vector<4x1xf32> to vector<1xf32>
    %25 = vector.shape_cast %24 : vector<1xf32> to vector<1x1xf32>
    %c0_10 = arith.constant 0 : index
    %c0_11 = arith.constant 0 : index
    %26 = vector.load %arg3[%c0_10, %c0_11] : memref<1x1xf32, #tpu.memory_space<vmem>>, vector<1x1xf32>
    tpu.vector_store %arg3[%c0_10, %c0_11], %25 {strides = array<i32>} : memref<1x1xf32, #tpu.memory_space<vmem>>, vector<1x1xf32>,
    return
  }
}

</mosaic_0001>

<llo_original>
// kernel: pointer_net_loss.1
$region0: #{pointer_net_loss.1}
  #allocation0 [shape = 'u32[]', space=smem, size = 0x4, offset = 0x4, fixed_abs, tag = 'smem constant byte address 0x4 - core index']
  #allocation1 [shape = 'u32[144,128]{1,0:T(1,128)}', space=vmem, size = 0x12000, scoped, tag = 'internal scratch']
  %s0 = inlined_call_operand.vmem [shape: s32[4,8], index: 0, kind: input, shape index: {}]
  %s1 = inlined_call_operand.hbm [shape: f32[4,8,8], index: 1, kind: input, shape index: {}]
  %s2 = inlined_call_operand.vmem [shape: s32[4,1], index: 2, kind: input, shape index: {}]
  %s3 = inlined_call_operand.hbm [shape: f32[1,1], index: 3, kind: output, shape index: {}]
  %s4 = sld [smem:[#allocation0]]
  $region26: #{pointer_net_loss.1} parent=0
    _
  %s6 = ssub.s32 1, %s4
  %s7 = scalar_select 0, %s6, %s4
  $region1: #{pointer_net_loss.1} parent=0
    #allocation2 [shape = 'u8[16384]{0}', space=vmem, size = 0x4000, scoped, tag = 'input window, operand 1, single buffered']
    #allocation3 [shape = 's32[1]{0}', space=sflag, size = 0x4, scoped, tag = 'scoped memory for pointer_net_loss.1']
    #allocation4 [shape = 's32[1]{0}', space=sflag, size = 0x4, scoped, tag = 'scoped memory for pointer_net_loss.1']
    #allocation5 [shape = 'u8[512]{0}', space=vmem, size = 0x400, scoped, tag = 'output window, operand 0, single buffered']
    %8 = vsyncpa [#allocation3], 0
    %9 = vsyncpa [#allocation4], 0
    // Predicated region
    $region2: #{pointer_net_loss.1} parent=1 // pred_check
      _
    $region3: #{pointer_net_loss.1} parent=1 // pred_check_branch
      %11 = sbr.rel (0) target = $region5
    $region4: #{pointer_net_loss.1} parent=1 // pred_region
      _
    $region5: #{pointer_net_loss.1} parent=1 // pred_fallthru
      _
    // Predicated region
    $region6: #{pointer_net_loss.1} parent=1 // pred_check
      _
    $region7: #{pointer_net_loss.1} parent=1 // pred_check_branch
      %13 = sbr.rel (0) target = $region9
    $region8: #{pointer_net_loss.1} parent=1 // pred_region
      %s15 = ssub.s32 512, 512
      %16 = vsyncadd [#allocation3], %s15
      %s17 = sshll.u32 [#allocation2], 4
      %s18 = int_to_ptr.vmem [resolvable:$true] %s17
      %23 = dma.hbm_to_vmem [thread:$0]  %s1, 512, %s18, [#allocation3], 128, 128, 8
    $region9: #{pointer_net_loss.1} parent=1 // pred_fallthru
      _
    // Predicated region
    $region10: #{pointer_net_loss.1} parent=1 // pred_check
      _
    $region11: #{pointer_net_loss.1} parent=1 // pred_check_branch
      %25 = sbr.rel (0) target = $region13
    $region12: #{pointer_net_loss.1} parent=1 // pred_region
      _
    $region13: #{pointer_net_loss.1} parent=1 // pred_fallthru
      _
    // Predicated region
    $region14: #{pointer_net_loss.1} parent=1 // pred_check
      _
    $region15: #{pointer_net_loss.1} parent=1 // pred_check_branch
      %27 = sbr.rel (0) target = $region17
    $region16: #{pointer_net_loss.1} parent=1 // pred_region
      %28 = dma.done [#allocation3], 512
    $region17: #{pointer_net_loss.1} parent=1 // pred_fallthru
      _
    %v29 = vld [vmem:[#allocation2] sm:$0xff]
    %v30 = vld [vmem:[#allocation2 + $0x8] sm:$0xff]
    %v31 = vld [vmem:[#allocation2 + $0x10] sm:$0xff]
    %v32 = vld [vmem:[#allocation2 + $0x18] sm:$0xff]
    %v33 = vld [vmem:[%s0] sm:$0xf]
    %v34 = vld [vmem:[%s2] sm:$0xf]
    %v35 = vmax.f32 %v29, 1e-15
    %v36 = vmax.f32 %v30, 1e-15
    %v37 = vmax.f32 %v31, 1e-15
    %v38 = vmax.f32 %v32, 1e-15
    %v39 = vlog2.pop %v35
    %v40 = vmul.f32 %v39, 0.6931472
    %v41 = vlog2.pop %v36
    %v42 = vmul.f32 %v41, 0.6931472
    %v43 = vlog2.pop %v37
    %v44 = vmul.f32 %v43, 0.6931472
    %v45 = vlog2.pop %v38
    %v46 = vmul.f32 %v45, 0.6931472
    %v47 = vlaneseq
    %v48 = vand.u32 %v47, 127
    %v49 = vlaneseq
    %v50 = vshrl.u32 %v49, 7
    %v51 = vsub.s32 0, %v50
    %v52 = vrot.slane %v33, %v51
    %54 = vbcast.lane.b32.xlu0 %v52, 256
    %v55 = vpop.permute.xlu0 %54
    %v56 = vlaneseq
    %v57 = vshrl.u32 %v56, 7
    %v58 = vsub.s32 1, %v57
    %v59 = vrot.slane %v33, %v58
    %61 = vbcast.lane.b32.xlu0 %v59, 256
    %v62 = vpop.permute.xlu0 %61
    %v63 = vlaneseq
    %v64 = vshrl.u32 %v63, 7
    %v65 = vsub.s32 2, %v64
    %v66 = vrot.slane %v33, %v65
    %68 = vbcast.lane.b32.xlu0 %v66, 256
    %v69 = vpop.permute.xlu0 %68
    %v70 = vlaneseq
    %v71 = vshrl.u32 %v70, 7
    %v72 = vsub.s32 3, %v71
    %v73 = vrot.slane %v33, %v72
    %75 = vbcast.lane.b32.xlu0 %v73, 256
    %v76 = vpop.permute.xlu0 %75
    %vm77 = vcmp.eq.s32.totalorder %v48, %v55
    %vm78 = vcmp.eq.s32.totalorder %v48, %v62
    %vm79 = vcmp.eq.s32.totalorder %v48, %v69
    %vm80 = vcmp.eq.s32.totalorder %v48, %v76
    %v81 = vsel %vm77, 1, 0
    %v82 = vsel %vm78, 1, 0
    %v83 = vsel %vm79, 1, 0
    %v84 = vsel %vm80, 1, 0
    %v85 = vcvt.s32.f32 %v81
    %v86 = vcvt.s32.f32 %v82
    %v87 = vcvt.s32.f32 %v83
    %v88 = vcvt.s32.f32 %v84
    %v89 = vmul.f32 %v40, %v85
    %v90 = vmul.f32 %v42, %v86
    %v91 = vmul.f32 %v44, %v87
    %v92 = vmul.f32 %v46, %v88
    %vm93 = vcmask 64512
    %v94 = vsel %vm93, %v89, 0.0
    %95 = vadd.xlane.f32.xlu0 %v94
    %v96 = vpop.xlane.xlu0 %95
    %v97 = vsel %vm93, %v90, 0.0
    %98 = vadd.xlane.f32.xlu0 %v97
    %v99 = vpop.xlane.xlu0 %98
    %v100 = vsel %vm93, %v91, 0.0
    %101 = vadd.xlane.f32.xlu0 %v100
    %v102 = vpop.xlane.xlu0 %101
    %v103 = vsel %vm93, %v92, 0.0
    %104 = vadd.xlane.f32.xlu0 %v103
    %v105 = vpop.xlane.xlu0 %104
    %v106 = vsub.f32 0.0, %v96
    %v107 = vsub.f32 0.0, %v99
    %v108 = vsub.f32 0.0, %v102
    %v109 = vsub.f32 0.0, %v105
    %110 = vset.pattern.permute.xlu0 0
    %111 = vperm.xlu0 %110, %v34
    %v112 = vpop.permute.xlu0 %111
    %vm113 = vcmp.lt.s32.totalorder %v48, %v112
    %v114 = vsel %vm113, 1, 0
    %v115 = vcvt.s32.f32 %v114
    %v117 = vlaneseq
    %v118 = vshrl.u32 %v117, 7
    %v119 = vsub.s32 0, %v118
    %v120 = vrot.slane %v115, %v119
    %122 = vbcast.lane.b32.xlu0 %v120, 256
    %v123 = vpop.permute.xlu0 %122
    %v124 = vlaneseq
    %v125 = vshrl.u32 %v124, 7
    %v126 = vsub.s32 1, %v125
    %v127 = vrot.slane %v115, %v126
    %129 = vbcast.lane.b32.xlu0 %v127, 256
    %v130 = vpop.permute.xlu0 %129
    %v131 = vlaneseq
    %v132 = vshrl.u32 %v131, 7
    %v133 = vsub.s32 2, %v132
    %v134 = vrot.slane %v115, %v133
    %136 = vbcast.lane.b32.xlu0 %v134, 256
    %v137 = vpop.permute.xlu0 %136
    %v138 = vlaneseq
    %v139 = vshrl.u32 %v138, 7
    %v140 = vsub.s32 3, %v139
    %v141 = vrot.slane %v115, %v140
    %143 = vbcast.lane.b32.xlu0 %v141, 256
    %v144 = vpop.permute.xlu0 %143
    %v149 = vmul.f32 %v106, %v123
    %v150 = vmul.f32 %v107, %v130
    %v151 = vmul.f32 %v108, %v137
    %v152 = vmul.f32 %v109, %v144
    %157 = vset.pattern.permute.xlu0 0
    %158 = vperm.xlu0 %157, %v149
    %v159 = vpop.permute.xlu0 %158
    %160 = vset.pattern.permute.xlu0 0
    %161 = vperm.xlu0 %160, %v150
    %v162 = vpop.permute.xlu0 %161
    %163 = vset.pattern.permute.xlu0 0
    %164 = vperm.xlu0 %163, %v151
    %v165 = vpop.permute.xlu0 %164
    %166 = vset.pattern.permute.xlu0 0
    %167 = vperm.xlu0 %166, %v152
    %v168 = vpop.permute.xlu0 %167
    %v169 = vlaneseq
    %v170 = vshrl.u32 %v169, 7
    %v171 = vsub.s32 %v48, %v170
    %v172 = vrot.slane %v159, %v171
    %v173 = vlaneseq
    %v174 = vshrl.u32 %v173, 7
    %v175 = vsub.s32 %v48, %v174
    %v176 = vrot.slane %v162, %v175
    %v177 = vlaneseq
    %v178 = vshrl.u32 %v177, 7
    %v179 = vsub.s32 %v48, %v178
    %v180 = vrot.slane %v165, %v179
    %v181 = vlaneseq
    %v182 = vshrl.u32 %v181, 7
    %v183 = vsub.s32 %v48, %v182
    %v184 = vrot.slane %v168, %v183
    %vm185 = vcmask 1041409
    %v186 = vsel %vm185, %v176, %v172
    %vm187 = vcmask 1042434
    %v188 = vsel %vm187, %v180, %v186
    %vm189 = vcmask 1043459
    %v190 = vsel %vm189, %v184, %v188
    %vm192 = vcmask 60416
    %v193 = vsel %vm192, %v190, 0.0
    %194 = vadd.xlane.f32.xlu0 %v193
    %v195 = vpop.xlane.xlu0 %194
    %vm196 = vcmask 1043456
    %v197 = vsel %vm196, %v195, 0.0
    %v198 = vrot.slane %v197, 4
    %v199 = vadd.f32 %v197, %v198
    %v200 = vrot.slane %v199, 2
    %v201 = vadd.f32 %v199, %v200
    %v202 = vrot.slane %v201, 1
    %v203 = vadd.f32 %v201, %v202
    %vm204 = vcmask 0
    %205 = vst.msk [vmem:[#allocation5] sm:$0x1] %vm204, %v203
    // Predicated region
    $region18: #{pointer_net_loss.1} parent=1 // pred_check
      _
    $region19: #{pointer_net_loss.1} parent=1 // pred_check_branch
      %207 = sbr.rel (0) target = $region21
    $region20: #{pointer_net_loss.1} parent=1 // pred_region
      %s209 = ssub.s32 16, 16
      %210 = vsyncadd [#allocation4], %s209
      %s212 = sshll.u32 [#allocation5], 4
      %s213 = int_to_ptr.vmem [resolvable:$true] %s212
      %215 = dma.vmem_to_hbm [thread:$0]  %s213, 16, %s3, [#allocation4]
    $region21: #{pointer_net_loss.1} parent=1 // pred_fallthru
      _
    // Predicated region
    $region22: #{pointer_net_loss.1} parent=1 // pred_check
      _
    $region23: #{pointer_net_loss.1} parent=1 // pred_check_branch
      %217 = sbr.rel (0) target = $region25
    $region24: #{pointer_net_loss.1} parent=1 // pred_region
      %218 = dma.done [#allocation4], 16
    $region25: #{pointer_net_loss.1} parent=1 // pred_fallthru
      _
    %219 = vsyncpa [#allocation3], 1
    %220 = vsyncpa [#allocation4], 1

</llo_original>
